<compile_context>
chip_gen: v5e
topology: v5e:2x2
jax: 0.10.0
libtpu: 0.0.40
codegen_flags: <defaults>
</compile_context>

<pallas_src>
import functools

import jax
import jax.numpy as jnp
from jax.experimental import pallas as pl
from jax.experimental.pallas import tpu as pltpu

NEG_SLOPE = 0.01     # F.leaky_relu default negative_slope
HIDDEN = 50
HIDDEN_PAD = 64      # sublane-aligned (multiple of 8) hidden width
MIN_PALLAS_BATCH = 128  # below this, plain jnp is cheaper than pallas_call fixed cost


def _round_up(x, m):
    return ((x + m - 1) // m) * m


def _leaky_relu(x):
    # max(x, slope*x) == leaky_relu for 0 < slope < 1; one fewer VALU op than where().
    return jnp.maximum(x, NEG_SLOPE * x)


def dqn_kernel(x_ref, w1_ref, b1_ref, w2_ref, b2_ref, w3_ref, b3_ref, o_ref):
    # Full forward fused in one block: 3 MXU matmuls + VPU leaky-relus,
    # f32 accumulation via preferred_element_type; biases stay f32.
    x = x_ref[...].astype(w1_ref.dtype)          # keep bf16 weight path on fast MXU mode
    h1 = jnp.dot(x, w1_ref[...], preferred_element_type=jnp.float32) + b1_ref[...]
    h1 = _leaky_relu(h1).astype(w2_ref.dtype)
    h2 = jnp.dot(h1, w2_ref[...], preferred_element_type=jnp.float32) + b2_ref[...]
    h2 = _leaky_relu(h2).astype(w3_ref.dtype)
    out = jnp.dot(h2, w3_ref[...], preferred_element_type=jnp.float32) + b3_ref[...]
    o_ref[...] = out.astype(o_ref.dtype)


@functools.partial(jax.jit, static_argnames=("block_b",))
def _dqn_pallas(x, w1, b1, w2, b2, w3, b3, *, block_b):
    B, F = x.shape
    Hp = w1.shape[1]
    Ap = w3.shape[1]          # padded action lanes (multiple of 8, NOT 128)
    grid_b = B // block_b     # caller guarantees divisibility

    # Weights/biases: full-array blocks with a constant index_map -> loaded once,
    # held resident in VMEM across all batch tiles.
    resident = lambda shape: pl.BlockSpec(shape, lambda i: (0, 0))

    out_dtype = jnp.float32
    flops = 2 * B * (F * Hp + Hp * Hp + Hp * Ap)
    bytes_accessed = (
        x.size * x.dtype.itemsize
        + B * Ap * jnp.dtype(out_dtype).itemsize
        + sum(a.size * a.dtype.itemsize for a in (w1, b1, w2, b2, w3, b3))
    )

    return pl.pallas_call(
        dqn_kernel,
        out_shape=jax.ShapeDtypeStruct((B, Ap), out_dtype),
        grid=(grid_b,),
        in_specs=[
            pl.BlockSpec((block_b, F), lambda i: (i, 0)),
            resident(w1.shape), resident(b1.shape),
            resident(w2.shape), resident(b2.shape),
            resident(w3.shape), resident(b3.shape),
        ],
        out_specs=pl.BlockSpec((block_b, Ap), lambda i: (i, 0)),
        compiler_params=pltpu.CompilerParams(
            dimension_semantics=("parallel",)),
        cost_estimate=pl.CostEstimate(
            flops=flops, transcendentals=0, bytes_accessed=bytes_accessed),
    )(x, w1, b1, w2, b2, w3, b3)


def dqn_forward(x, padded_params, num_actions, block_b=None):
    """x: (B, input_size) f32/bf16.  padded_params: output of pad_params()."""
    w1, b1, w2, b2, w3, b3 = padded_params
    B = x.shape[0]

    if B < MIN_PALLAS_BATCH:
        # Acting-size batch: pallas_call fixed cost dwarfs the compute; let XLA fuse.
        h1 = _leaky_relu(jnp.dot(x, w1) + b1)
        h2 = _leaky_relu(jnp.dot(h1, w2) + b2)
        return (jnp.dot(h2, w3) + b3)[:, :num_actions]

    if block_b is None:
        # >= 4 tiles where possible (>= 2 per TensorCore on v7x), capped at 1024 rows
        # to amortize the ~0.35 us per-grid-step overhead.  VMEM is a non-issue here.
        block_b = min(1024, max(MIN_PALLAS_BATCH, _round_up(pl.cdiv(B, 4), 8)))

    pad = (-B) % block_b
    xp = jnp.pad(x, ((0, pad), (0, 0))) if pad else x
    out = _dqn_pallas(xp, w1, b1, w2, b2, w3, b3, block_b=block_b)
    return out[:B, :num_actions]


def init_params(key, input_size, num_actions, hidden=HIDDEN):
    # PyTorch default nn.Linear init: U(-1/sqrt(fan_in), 1/sqrt(fan_in)) for W and b.
    # Weights stored as (in_features, out_features) so the kernel does x @ W + b.
    keys = jax.random.split(key, 6)

    def linear(kw, kb, fan_in, fan_out):
        bound = 1.0 / float(fan_in) ** 0.5
        w = jax.random.uniform(kw, (fan_in, fan_out), jnp.float32, -bound, bound)
        b = jax.random.uniform(kb, (1, fan_out), jnp.float32, -bound, bound)
        return w, b

    w1, b1 = linear(keys[0], keys[1], input_size, hidden)
    w2, b2 = linear(keys[2], keys[3], hidden, hidden)
    w3, b3 = linear(keys[4], keys[5], hidden, num_actions)
    return w1, b1, w2, b2, w3, b3


def pad_params(params, weight_dtype=jnp.float32):
    """Zero-pad hidden 50->64 (sublane aligned) and head num_actions -> round_up(.,8).
    Zero padding is mathematically inert (leaky_relu(0)=0, padded rows/cols are 0);
    the wrapper slice recovers exact logits.  Pass weight_dtype=jnp.bfloat16 to halve
    weight/activation DMA bytes (biases and accumulation stay f32)."""
    w1, b1, w2, b2, w3, b3 = params
    F = w1.shape[0]
    a_pad = _round_up(w3.shape[1], 8)   # output slab: small, NOT padded to 128 lanes

    def padw(a, rows, cols):
        return jnp.pad(a, ((0, rows - a.shape[0]), (0, cols - a.shape[1])))

    w1p = padw(w1, F, HIDDEN_PAD).astype(weight_dtype)
    b1p = padw(b1, 1, HIDDEN_PAD).astype(jnp.float32)
    w2p = padw(w2, HIDDEN_PAD, HIDDEN_PAD).astype(weight_dtype)
    b2p = padw(b2, 1, HIDDEN_PAD).astype(jnp.float32)
    w3p = padw(w3, HIDDEN_PAD, a_pad).astype(weight_dtype)
    b3p = padw(b3, 1, a_pad).astype(jnp.float32)
    return w1p, b1p, w2p, b2p, w3p, b3p


def dqn_reference(x, params):
    w1, b1, w2, b2, w3, b3 = params
    h1 = _leaky_relu(x @ w1 + b1)
    h2 = _leaky_relu(h1 @ w2 + b2)
    return h2 @ w3 + b3


if __name__ == "__main__":
    input_size = 16
    num_actions = 4

    key = jax.random.PRNGKey(0)
    kx_small, kx_big, kp = jax.random.split(key, 3)

    raw_params = init_params(kp, input_size, num_actions)
    padded_params = pad_params(raw_params)  # f32 demo; bf16 supported via weight_dtype

    # Acting-size batch: jnp fast path (no Pallas fixed overhead).
    x_small = jax.random.normal(kx_small, (8, input_size), jnp.float32)
    out_small = jax.block_until_ready(dqn_forward(x_small, padded_params, num_actions))
    ref_small = dqn_reference(x_small, raw_params)
    assert out_small.shape == (8, num_actions)
    assert jnp.allclose(out_small, ref_small, atol=1e-4, rtol=1e-4)

    # Training-size batch: gridded Pallas path, 4 batch tiles of 256 rows,
    # weights VMEM-resident across tiles, 8-lane output slab.
    x_big = jax.random.normal(kx_big, (1024, input_size), jnp.float32)
    out_big = jax.block_until_ready(dqn_forward(x_big, padded_params, num_actions))
    ref_big = dqn_reference(x_big, raw_params)
    assert out_big.shape == (1024, num_actions)
    assert jnp.allclose(out_big, ref_big, atol=1e-4, rtol=1e-4)

    # Non-divisible batch: exercises the batch-padding path (pad to 1024, 4 tiles).
    x_odd = jax.random.normal(kx_big, (1000, input_size), jnp.float32)
    out_odd = jax.block_until_ready(dqn_forward(x_odd, padded_params, num_actions))
    ref_odd = dqn_reference(x_odd, raw_params)
    assert out_odd.shape == (1000, num_actions)
    assert jnp.allclose(out_odd, ref_odd, atol=1e-4, rtol=1e-4)

    print("KERNEL_OK")
</pallas_src>

<mosaic_0001>
module attributes {stable_mosaic.version = 11 : i64} {
  func.func @dqn_kernel(%arg0: i32, %arg1: memref<256x16xf32, #tpu.memory_space<vmem>>, %arg2: memref<16x64xf32, #tpu.memory_space<vmem>>, %arg3: memref<1x64xf32, #tpu.memory_space<vmem>>, %arg4: memref<64x64xf32, #tpu.memory_space<vmem>>, %arg5: memref<1x64xf32, #tpu.memory_space<vmem>>, %arg6: memref<64x8xf32, #tpu.memory_space<vmem>>, %arg7: memref<1x8xf32, #tpu.memory_space<vmem>>, %arg8: memref<256x8xf32, #tpu.memory_space<vmem>>) attributes {dimension_semantics = [#tpu.dimension_semantics<parallel>], iteration_bounds = array<i64: 4>, scalar_prefetch = 0 : i64, scratch_operands = 0 : i64, tpu.core_type = #tpu.core_type<tc>, window_params = [{transform_indices = @transform_0, window_bounds = array<i64: 256, 16>}, {pipeline_mode = #tpu.pipeline_mode<synchronous>, transform_indices = @transform_1, window_bounds = array<i64: 16, 64>}, {pipeline_mode = #tpu.pipeline_mode<synchronous>, transform_indices = @transform_2, window_bounds = array<i64: 1, 64>}, {pipeline_mode = #tpu.pipeline_mode<synchronous>, transform_indices = @transform_3, window_bounds = array<i64: 64, 64>}, {pipeline_mode = #tpu.pipeline_mode<synchronous>, transform_indices = @transform_4, window_bounds = array<i64: 1, 64>}, {pipeline_mode = #tpu.pipeline_mode<synchronous>, transform_indices = @transform_5, window_bounds = array<i64: 64, 8>}, {pipeline_mode = #tpu.pipeline_mode<synchronous>, transform_indices = @transform_6, window_bounds = array<i64: 1, 8>}, {transform_indices = @transform_7, window_bounds = array<i64: 256, 8>}]} {
    %c0 = arith.constant 0 : index
    %c0_0 = arith.constant 0 : index
    %0 = vector.load %arg1[%c0, %c0_0] : memref<256x16xf32, #tpu.memory_space<vmem>>, vector<256x16xf32>
    %c0_1 = arith.constant 0 : index
    %c0_2 = arith.constant 0 : index
    %1 = vector.load %arg2[%c0_1, %c0_2] : memref<16x64xf32, #tpu.memory_space<vmem>>, vector<16x64xf32>
    %cst = arith.constant dense<0.000000e+00> : vector<256x64xf32>
    %2 = tpu.matmul %0, %1, %cst {dimension_numbers = #tpu.dot_dimension_numbers<[1], [0], [0], [1], [0, 0, 1, 1], [], []>} : vector<256x16xf32>, vector<16x64xf32>, vector<256x64xf32> -> vector<256x64xf32>
    %c0_3 = arith.constant 0 : index
    %c0_4 = arith.constant 0 : index
    %3 = vector.load %arg3[%c0_3, %c0_4] : memref<1x64xf32, #tpu.memory_space<vmem>>, vector<1x64xf32>
    %4 = vector.broadcast %3 : vector<1x64xf32> to vector<256x64xf32>
    %5 = arith.addf %2, %4 : vector<256x64xf32>
    %cst_5 = arith.constant 0.00999999977 : f32
    %6 = vector.broadcast %cst_5 : f32 to vector<256x64xf32>
    %7 = arith.mulf %6, %5 : vector<256x64xf32>
    %8 = arith.maximumf %5, %7 : vector<256x64xf32>
    %c0_6 = arith.constant 0 : index
    %c0_7 = arith.constant 0 : index
    %9 = vector.load %arg4[%c0_6, %c0_7] : memref<64x64xf32, #tpu.memory_space<vmem>>, vector<64x64xf32>
    %cst_8 = arith.constant dense<0.000000e+00> : vector<256x64xf32>
    %10 = tpu.matmul %8, %9, %cst_8 {dimension_numbers = #tpu.dot_dimension_numbers<[1], [0], [0], [1], [0, 0, 1, 1], [], []>} : vector<256x64xf32>, vector<64x64xf32>, vector<256x64xf32> -> vector<256x64xf32>
    %c0_9 = arith.constant 0 : index
    %c0_10 = arith.constant 0 : index
    %11 = vector.load %arg5[%c0_9, %c0_10] : memref<1x64xf32, #tpu.memory_space<vmem>>, vector<1x64xf32>
    %12 = vector.broadcast %11 : vector<1x64xf32> to vector<256x64xf32>
    %13 = arith.addf %10, %12 : vector<256x64xf32>
    %cst_11 = arith.constant 0.00999999977 : f32
    %14 = vector.broadcast %cst_11 : f32 to vector<256x64xf32>
    %15 = arith.mulf %14, %13 : vector<256x64xf32>
    %16 = arith.maximumf %13, %15 : vector<256x64xf32>
    %c0_12 = arith.constant 0 : index
    %c0_13 = arith.constant 0 : index
    %17 = vector.load %arg6[%c0_12, %c0_13] : memref<64x8xf32, #tpu.memory_space<vmem>>, vector<64x8xf32>
    %cst_14 = arith.constant dense<0.000000e+00> : vector<256x8xf32>
    %18 = tpu.matmul %16, %17, %cst_14 {dimension_numbers = #tpu.dot_dimension_numbers<[1], [0], [0], [1], [0, 0, 1, 1], [], []>} : vector<256x64xf32>, vector<64x8xf32>, vector<256x8xf32> -> vector<256x8xf32>
    %c0_15 = arith.constant 0 : index
    %c0_16 = arith.constant 0 : index
    %19 = vector.load %arg7[%c0_15, %c0_16] : memref<1x8xf32, #tpu.memory_space<vmem>>, vector<1x8xf32>
    %20 = vector.broadcast %19 : vector<1x8xf32> to vector<256x8xf32>
    %21 = arith.addf %18, %20 : vector<256x8xf32>
    %c0_17 = arith.constant 0 : index
    %c0_18 = arith.constant 0 : index
    %22 = vector.load %arg8[%c0_17, %c0_18] : memref<256x8xf32, #tpu.memory_space<vmem>>, vector<256x8xf32>
    tpu.vector_store %arg8[%c0_17, %c0_18], %21 {strides = array<i32>} : memref<256x8xf32, #tpu.memory_space<vmem>>, vector<256x8xf32>,
    return
  }
  func.func @transform_0(%arg0: i32) -> (i32, i32) {
    %c0_i32 = arith.constant 0 : i32
    %c0_i32_0 = arith.constant 0 : i32
    return %arg0, %c0_i32 : i32, i32
  }
  func.func @transform_1(%arg0: i32) -> (i32, i32) {
    %c0_i32 = arith.constant 0 : i32
    %c0_i32_0 = arith.constant 0 : i32
    %c0_i32_1 = arith.constant 0 : i32
    return %c0_i32, %c0_i32_0 : i32, i32
  }
  func.func @transform_2(%arg0: i32) -> (i32, i32) {
    %c0_i32 = arith.constant 0 : i32
    %c0_i32_0 = arith.constant 0 : i32
    %c0_i32_1 = arith.constant 0 : i32
    return %c0_i32, %c0_i32_0 : i32, i32
  }
  func.func @transform_3(%arg0: i32) -> (i32, i32) {
    %c0_i32 = arith.constant 0 : i32
    %c0_i32_0 = arith.constant 0 : i32
    %c0_i32_1 = arith.constant 0 : i32
    return %c0_i32, %c0_i32_0 : i32, i32
  }
  func.func @transform_4(%arg0: i32) -> (i32, i32) {
    %c0_i32 = arith.constant 0 : i32
    %c0_i32_0 = arith.constant 0 : i32
    %c0_i32_1 = arith.constant 0 : i32
    return %c0_i32, %c0_i32_0 : i32, i32
  }
  func.func @transform_5(%arg0: i32) -> (i32, i32) {
    %c0_i32 = arith.constant 0 : i32
    %c0_i32_0 = arith.constant 0 : i32
    %c0_i32_1 = arith.constant 0 : i32
    return %c0_i32, %c0_i32_0 : i32, i32
  }
  func.func @transform_6(%arg0: i32) -> (i32, i32) {
    %c0_i32 = arith.constant 0 : i32
    %c0_i32_0 = arith.constant 0 : i32
    %c0_i32_1 = arith.constant 0 : i32
    return %c0_i32, %c0_i32_0 : i32, i32
  }
  func.func @transform_7(%arg0: i32) -> (i32, i32) {
    %c0_i32 = arith.constant 0 : i32
    %c0_i32_0 = arith.constant 0 : i32
    return %arg0, %c0_i32 : i32, i32
  }
}

</mosaic_0001>

<llo_original>
// kernel: _dqn_pallas.1
$region0: #{_dqn_pallas.1}
  #allocation0 [shape = 'u32[]', space=smem, size = 0x4, offset = 0x4, fixed_abs, tag = 'smem constant byte address 0x4 - core index']
  #allocation1 [shape = 'u32[72,128]{1,0:T(1,128)}', space=vmem, size = 0x9000, scoped, tag = 'internal scratch']
  %s0 = inlined_call_operand.vmem [shape: f32[1024,16], index: 0, kind: input, shape index: {}]
  %s1 = inlined_call_operand.vmem [shape: f32[16,64], index: 1, kind: input, shape index: {}]
  %s2 = inlined_call_operand.vmem [shape: f32[1,64], index: 2, kind: input, shape index: {}]
  %s3 = inlined_call_operand.vmem [shape: f32[64,64], index: 3, kind: input, shape index: {}]
  %s4 = inlined_call_operand.vmem [shape: f32[1,64], index: 4, kind: input, shape index: {}]
  %s5 = inlined_call_operand.vmem [shape: f32[64,8], index: 5, kind: input, shape index: {}]
  %s6 = inlined_call_operand.vmem [shape: f32[1,8], index: 6, kind: input, shape index: {}]
  %s7 = inlined_call_operand.vmem [shape: f32[1024,8], index: 7, kind: output, shape index: {}]
  %s8 = sld [smem:[#allocation0]]
  $region61: #{_dqn_pallas.1} parent=0
    _
  %s10 = ssub.s32 1, %s8
  %s11 = scalar_select 0, %s10, %s8
  loop: start=0, step=1, limit=6
  $region2: #{_dqn_pallas.1} parent=0 // loop_pre_header
    _
  $region3: #{_dqn_pallas.1} parent=0 // loop_header
    %s13 = sphi 0, %s17
    %p14 = scmp.ge.s32.totalorder %s13, 6
    %s23 = sphi 0, %s25
    %s26 = sphi 0, %s23
    %s27 = sphi 0, %s26
    %s43 = sphi 0, %s27
    %s47 = sphi 0, %s47
    %s49 = sphi 0, %s47
    %s50 = sphi 0, %s49
    %s64 = sphi 0, %s50
    %s68 = sphi 0, %s68
    %s70 = sphi 0, %s68
    %s71 = sphi 0, %s70
    %s85 = sphi 0, %s71
    %s89 = sphi 0, %s89
    %s91 = sphi 0, %s89
    %s92 = sphi 0, %s91
    %s106 = sphi 0, %s92
    %s110 = sphi 0, %s110
    %s112 = sphi 0, %s110
    %s113 = sphi 0, %s112
    %s127 = sphi 0, %s113
    %s131 = sphi 0, %s131
    %s133 = sphi 0, %s131
    %s134 = sphi 0, %s133
    %s148 = sphi 0, %s134
    %s152 = sphi 0, %s152
    %s154 = sphi 0, %s152
    %s155 = sphi 0, %s154
    %s169 = sphi 0, %s155
    %s175 = sphi 0, %s177
    %s178 = sphi 0, %s175
    %s179 = sphi 0, %s178
    %s195 = sphi 0, %s179
  $region4: #{_dqn_pallas.1} parent=0 // loop_header_branch
    %16 = sbr.rel (%p14) target = $region8
  $region5: #{_dqn_pallas.1} parent=0 // loop_body
    %s18 = ssub.s32 %s13, 1
    %s19 = ssub.s32 %s13, 2
    %s20 = sadd.s32 %s13, 1
    %s21 = ssub.s32 %s13, %s20
    %p22 = scmp.eq.s32.totalorder %s21, 0
    %s24 = sadd.s32 %s23, 1
    %s25 = scalar_select %p22, %s23, %s24
    %p28 = pneg %p22
    %p29 = scmp.eq.s32.totalorder %s13, 3
    %p30 = por %p28, %p29
    %p31 = scmp.ne.s32.totalorder %s23, %s26
    %p32 = scmp.eq.s32.totalorder %s13, 0
    %p33 = por %p31, %p32
    %p34 = scmp.ne.s32.totalorder %s23, %s26
    %p35 = scmp.eq.s32.totalorder %s18, 3
    %p36 = por %p34, %p35
    %p37 = scmp.ne.s32.totalorder %s26, %s27
    %p38 = scmp.eq.s32.totalorder %s18, 0
    %p39 = por %p37, %p38
    %p40 = scmp.ne.s32.totalorder %s26, %s27
    %p41 = scmp.eq.s32.totalorder %s19, 3
    %p42 = por %p40, %p41
    %p44 = scmp.ne.s32.totalorder %s27, %s43
    %p45 = scmp.eq.s32.totalorder %s19, 0
    %p46 = por %p44, %p45
    %s48 = sadd.s32 %s47, 1
    %p51 = scmp.eq.s32.totalorder %s13, 3
    %p52 = scmp.ne.s32.totalorder %s47, %s49
    %p53 = scmp.eq.s32.totalorder %s13, 0
    %p54 = por %p52, %p53
    %p55 = scmp.ne.s32.totalorder %s47, %s49
    %p56 = scmp.eq.s32.totalorder %s18, 3
    %p57 = por %p55, %p56
    %p58 = scmp.ne.s32.totalorder %s49, %s50
    %p59 = scmp.eq.s32.totalorder %s18, 0
    %p60 = por %p58, %p59
    %p61 = scmp.ne.s32.totalorder %s49, %s50
    %p62 = scmp.eq.s32.totalorder %s19, 3
    %p63 = por %p61, %p62
    %p65 = scmp.ne.s32.totalorder %s50, %s64
    %p66 = scmp.eq.s32.totalorder %s19, 0
    %p67 = por %p65, %p66
    %s69 = sadd.s32 %s68, 1
    %p72 = scmp.eq.s32.totalorder %s13, 3
    %p73 = scmp.ne.s32.totalorder %s68, %s70
    %p74 = scmp.eq.s32.totalorder %s13, 0
    %p75 = por %p73, %p74
    %p76 = scmp.ne.s32.totalorder %s68, %s70
    %p77 = scmp.eq.s32.totalorder %s18, 3
    %p78 = por %p76, %p77
    %p79 = scmp.ne.s32.totalorder %s70, %s71
    %p80 = scmp.eq.s32.totalorder %s18, 0
    %p81 = por %p79, %p80
    %p82 = scmp.ne.s32.totalorder %s70, %s71
    %p83 = scmp.eq.s32.totalorder %s19, 3
    %p84 = por %p82, %p83
    %p86 = scmp.ne.s32.totalorder %s71, %s85
    %p87 = scmp.eq.s32.totalorder %s19, 0
    %p88 = por %p86, %p87
    %s90 = sadd.s32 %s89, 1
    %p93 = scmp.eq.s32.totalorder %s13, 3
    %p94 = scmp.ne.s32.totalorder %s89, %s91
    %p95 = scmp.eq.s32.totalorder %s13, 0
    %p96 = por %p94, %p95
    %p97 = scmp.ne.s32.totalorder %s89, %s91
    %p98 = scmp.eq.s32.totalorder %s18, 3
    %p99 = por %p97, %p98
    %p100 = scmp.ne.s32.totalorder %s91, %s92
    %p101 = scmp.eq.s32.totalorder %s18, 0
    %p102 = por %p100, %p101
    %p103 = scmp.ne.s32.totalorder %s91, %s92
    %p104 = scmp.eq.s32.totalorder %s19, 3
    %p105 = por %p103, %p104
    %p107 = scmp.ne.s32.totalorder %s92, %s106
    %p108 = scmp.eq.s32.totalorder %s19, 0
    %p109 = por %p107, %p108
    %s111 = sadd.s32 %s110, 1
    %p114 = scmp.eq.s32.totalorder %s13, 3
    %p115 = scmp.ne.s32.totalorder %s110, %s112
    %p116 = scmp.eq.s32.totalorder %s13, 0
    %p117 = por %p115, %p116
    %p118 = scmp.ne.s32.totalorder %s110, %s112
    %p119 = scmp.eq.s32.totalorder %s18, 3
    %p120 = por %p118, %p119
    %p121 = scmp.ne.s32.totalorder %s112, %s113
    %p122 = scmp.eq.s32.totalorder %s18, 0
    %p123 = por %p121, %p122
    %p124 = scmp.ne.s32.totalorder %s112, %s113
    %p125 = scmp.eq.s32.totalorder %s19, 3
    %p126 = por %p124, %p125
    %p128 = scmp.ne.s32.totalorder %s113, %s127
    %p129 = scmp.eq.s32.totalorder %s19, 0
    %p130 = por %p128, %p129
    %s132 = sadd.s32 %s131, 1
    %p135 = scmp.eq.s32.totalorder %s13, 3
    %p136 = scmp.ne.s32.totalorder %s131, %s133
    %p137 = scmp.eq.s32.totalorder %s13, 0
    %p138 = por %p136, %p137
    %p139 = scmp.ne.s32.totalorder %s131, %s133
    %p140 = scmp.eq.s32.totalorder %s18, 3
    %p141 = por %p139, %p140
    %p142 = scmp.ne.s32.totalorder %s133, %s134
    %p143 = scmp.eq.s32.totalorder %s18, 0
    %p144 = por %p142, %p143
    %p145 = scmp.ne.s32.totalorder %s133, %s134
    %p146 = scmp.eq.s32.totalorder %s19, 3
    %p147 = por %p145, %p146
    %p149 = scmp.ne.s32.totalorder %s134, %s148
    %p150 = scmp.eq.s32.totalorder %s19, 0
    %p151 = por %p149, %p150
    %s153 = sadd.s32 %s152, 1
    %p156 = scmp.eq.s32.totalorder %s13, 3
    %p157 = scmp.ne.s32.totalorder %s152, %s154
    %p158 = scmp.eq.s32.totalorder %s13, 0
    %p159 = por %p157, %p158
    %p160 = scmp.ne.s32.totalorder %s152, %s154
    %p161 = scmp.eq.s32.totalorder %s18, 3
    %p162 = por %p160, %p161
    %p163 = scmp.ne.s32.totalorder %s154, %s155
    %p164 = scmp.eq.s32.totalorder %s18, 0
    %p165 = por %p163, %p164
    %p166 = scmp.ne.s32.totalorder %s154, %s155
    %p167 = scmp.eq.s32.totalorder %s19, 3
    %p168 = por %p166, %p167
    %p170 = scmp.ne.s32.totalorder %s155, %s169
    %p171 = scmp.eq.s32.totalorder %s19, 0
    %p172 = por %p170, %p171
    %s173 = ssub.s32 %s13, %s20
    %p174 = scmp.eq.s32.totalorder %s173, 0
    %s176 = sadd.s32 %s175, 1
    %s177 = scalar_select %p174, %s175, %s176
    %p180 = pneg %p174
    %p181 = scmp.eq.s32.totalorder %s13, 3
    %p182 = por %p180, %p181
    %p183 = scmp.ne.s32.totalorder %s175, %s178
    %p184 = scmp.eq.s32.totalorder %s13, 0
    %p185 = por %p183, %p184
    %p186 = scmp.ne.s32.totalorder %s175, %s178
    %p187 = scmp.eq.s32.totalorder %s18, 3
    %p188 = por %p186, %p187
    %p189 = scmp.ne.s32.totalorder %s178, %s179
    %p190 = scmp.eq.s32.totalorder %s18, 0
    %p191 = por %p189, %p190
    %p192 = scmp.ne.s32.totalorder %s178, %s179
    %p193 = scmp.eq.s32.totalorder %s19, 3
    %p194 = por %p192, %p193
    %p196 = scmp.ne.s32.totalorder %s179, %s195
    %p197 = scmp.eq.s32.totalorder %s19, 0
    %p198 = por %p196, %p197
    %p199 = scmp.le.s32.totalorder 1, %s13
    %p200 = scmp.lt.s32.totalorder %s13, 5
    %p201 = pnand %p199, %p200
    %p202 = pneg %p201
    // Predicated region
    $region9: #{_dqn_pallas.1} parent=5 // pred_check
      _
    $region10: #{_dqn_pallas.1} parent=5 // pred_check_branch
      %204 = sbr.rel (%p201) target = $region12
    $region11: #{_dqn_pallas.1} parent=5 // pred_region
      %s205 = ssub.s32 %s13, 1
      // Predicated region
      $region13: #{_dqn_pallas.1} parent=11 // pred_check
        %p206 = pneg %p60
      $region14: #{_dqn_pallas.1} parent=11 // pred_check_branch
        %208 = sbr.rel (%p206) target = $region16
      $region15: #{_dqn_pallas.1} parent=11 // pred_region
        _
      $region16: #{_dqn_pallas.1} parent=11 // pred_fallthru
        _
      // Predicated region
      $region17: #{_dqn_pallas.1} parent=11 // pred_check
        %p209 = pneg %p81
      $region18: #{_dqn_pallas.1} parent=11 // pred_check_branch
        %211 = sbr.rel (%p209) target = $region20
      $region19: #{_dqn_pallas.1} parent=11 // pred_region
        _
      $region20: #{_dqn_pallas.1} parent=11 // pred_fallthru
        _
      // Predicated region
      $region21: #{_dqn_pallas.1} parent=11 // pred_check
        %p212 = pneg %p102
      $region22: #{_dqn_pallas.1} parent=11 // pred_check_branch
        %214 = sbr.rel (%p212) target = $region24
      $region23: #{_dqn_pallas.1} parent=11 // pred_region
        _
      $region24: #{_dqn_pallas.1} parent=11 // pred_fallthru
        _
      // Predicated region
      $region25: #{_dqn_pallas.1} parent=11 // pred_check
        %p215 = pneg %p123
      $region26: #{_dqn_pallas.1} parent=11 // pred_check_branch
        %217 = sbr.rel (%p215) target = $region28
      $region27: #{_dqn_pallas.1} parent=11 // pred_region
        _
      $region28: #{_dqn_pallas.1} parent=11 // pred_fallthru
        _
      // Predicated region
      $region29: #{_dqn_pallas.1} parent=11 // pred_check
        %p218 = pneg %p144
      $region30: #{_dqn_pallas.1} parent=11 // pred_check_branch
        %220 = sbr.rel (%p218) target = $region32
      $region31: #{_dqn_pallas.1} parent=11 // pred_region
        _
      $region32: #{_dqn_pallas.1} parent=11 // pred_fallthru
        _
      // Predicated region
      $region33: #{_dqn_pallas.1} parent=11 // pred_check
        %p221 = pneg %p165
      $region34: #{_dqn_pallas.1} parent=11 // pred_check_branch
        %223 = sbr.rel (%p221) target = $region36
      $region35: #{_dqn_pallas.1} parent=11 // pred_region
        _
      $region36: #{_dqn_pallas.1} parent=11 // pred_fallthru
        _
    $region12: #{_dqn_pallas.1} parent=5 // pred_fallthru
      _
    %p224 = scmp.lt.s32.totalorder %s13, 4
    // Predicated region
    $region37: #{_dqn_pallas.1} parent=5 // pred_check
      %p225 = pneg %p224
    $region38: #{_dqn_pallas.1} parent=5 // pred_check_branch
      %227 = sbr.rel (%p225) target = $region40
    $region39: #{_dqn_pallas.1} parent=5 // pred_region
      // Predicated region
      $region41: #{_dqn_pallas.1} parent=39 // pred_check
        %p228 = pneg %p33
      $region42: #{_dqn_pallas.1} parent=39 // pred_check_branch
        %230 = sbr.rel (%p228) target = $region44
      $region43: #{_dqn_pallas.1} parent=39 // pred_region
        %s231 = smul.u32 32, %s13
        %p232 = scmp.lt.s32.totalorder %s231, 127
        %s233 = scalar_select %p232, %s231, 127
        %s234 = smul.addr %s233, 8
        %s235 = scalar_lea.vmem %s0, %s234
        %s236 = smul.u32 32, %s13
      $region44: #{_dqn_pallas.1} parent=39 // pred_fallthru
        _
    $region40: #{_dqn_pallas.1} parent=5 // pred_fallthru
      _
    %p237 = scmp.le.s32.totalorder 1, %s13
    %p238 = scmp.lt.s32.totalorder %s13, 5
    %p239 = pnand %p237, %p238
    %p240 = pneg %p239
    // Predicated region
    $region45: #{_dqn_pallas.1} parent=5 // pred_check
      _
    $region46: #{_dqn_pallas.1} parent=5 // pred_check_branch
      %242 = sbr.rel (%p239) target = $region48
    $region47: #{_dqn_pallas.1} parent=5 // pred_region
      %s243 = ssub.s32 %s13, 1
      %s244 = smul.u32 32, %s18
      %p245 = scmp.lt.s32.totalorder %s244, 127
      %s246 = scalar_select %p245, %s244, 127
      %s247 = smul.addr %s246, 8
      %s248 = scalar_lea.vmem %s0, %s247
      %p249 = pneg %p39
      %p250 = pneg %p36
      %p251 = pneg %p60
      %p252 = pneg %p57
      %p253 = pneg %p81
      %p254 = pneg %p78
      %p255 = pneg %p102
      %p256 = pneg %p99
      %p257 = pneg %p123
      %p258 = pneg %p120
      %p259 = pneg %p144
      %p260 = pneg %p141
      %p261 = pneg %p165
      %p262 = pneg %p162
      %p263 = pneg %p191
      %p264 = pneg %p188
      %s265 = smul.u32 32, %s18
      %p266 = scmp.lt.s32.totalorder %s265, 127
      %s267 = scalar_select %p266, %s265, 127
      %s268 = smul.addr %s267, 8
      %s269 = scalar_lea.vmem %s7, %s268
      %s270 = smul.u32 32, %s18
      %p271 = scmp.lt.s32.totalorder %s270, 127
      %s272 = scalar_select %p271, %s270, 127
      %s273 = smul.addr %s272, 8
      %s274 = scalar_lea.vmem %s0, %s273
      %s275 = smul.u32 32, %s18
      %s276 = smul.u32 32, %s18
      %p277 = scmp.lt.s32.totalorder %s276, 127
      %s278 = scalar_select %p277, %s276, 127
      %s279 = smul.addr %s278, 8
      %s280 = scalar_lea.vmem %s7, %s279
      %s281 = smul.u32 32, %s18
      %v282 = vld [vmem:[%s274] sm:$0xff]
      %v283 = vld [vmem:[%s274 + $0x8] sm:$0xff]
      %v284 = vld [vmem:[%s274 + $0x10] sm:$0xff]
      %v285 = vld [vmem:[%s274 + $0x18] sm:$0xff]
      %v286 = vld [vmem:[%s274 + $0x20] sm:$0xff]
      %v287 = vld [vmem:[%s274 + $0x28] sm:$0xff]
      %v288 = vld [vmem:[%s274 + $0x30] sm:$0xff]
      %v289 = vld [vmem:[%s274 + $0x38] sm:$0xff]
      %v290 = vld [vmem:[%s274 + $0x40] sm:$0xff]
      %v291 = vld [vmem:[%s274 + $0x48] sm:$0xff]
      %v292 = vld [vmem:[%s274 + $0x50] sm:$0xff]
      %v293 = vld [vmem:[%s274 + $0x58] sm:$0xff]
      %v294 = vld [vmem:[%s274 + $0x60] sm:$0xff]
      %v295 = vld [vmem:[%s274 + $0x68] sm:$0xff]
      %v296 = vld [vmem:[%s274 + $0x70] sm:$0xff]
      %v297 = vld [vmem:[%s274 + $0x78] sm:$0xff]
      %v298 = vld [vmem:[%s274 + $0x80] sm:$0xff]
      %v299 = vld [vmem:[%s274 + $0x88] sm:$0xff]
      %v300 = vld [vmem:[%s274 + $0x90] sm:$0xff]
      %v301 = vld [vmem:[%s274 + $0x98] sm:$0xff]
      %v302 = vld [vmem:[%s274 + $0xa0] sm:$0xff]
      %v303 = vld [vmem:[%s274 + $0xa8] sm:$0xff]
      %v304 = vld [vmem:[%s274 + $0xb0] sm:$0xff]
      %v305 = vld [vmem:[%s274 + $0xb8] sm:$0xff]
      %v306 = vld [vmem:[%s274 + $0xc0] sm:$0xff]
      %v307 = vld [vmem:[%s274 + $0xc8] sm:$0xff]
      %v308 = vld [vmem:[%s274 + $0xd0] sm:$0xff]
      %v309 = vld [vmem:[%s274 + $0xd8] sm:$0xff]
      %v310 = vld [vmem:[%s274 + $0xe0] sm:$0xff]
      %v311 = vld [vmem:[%s274 + $0xe8] sm:$0xff]
      %v312 = vld [vmem:[%s274 + $0xf0] sm:$0xff]
      %v313 = vld [vmem:[%s274 + $0xf8] sm:$0xff]
      %v314 = vld [vmem:[%s1] sm:$0xff]
      %v315 = vld [vmem:[%s1 + $0x8] sm:$0xff]
      %v316 = vld [vmem:[%s2] sm:$0x1]
      %v318 = vperm.slane %v316, 0
      %vm320 = vcmask 130048
      %v322 = vsel %vm320, %v282, 0
      %v325 = vsel %vm320, %v283, 0
      %v328 = vsel %vm320, %v284, 0
      %v331 = vsel %vm320, %v285, 0
      %v334 = vsel %vm320, %v286, 0
      %v337 = vsel %vm320, %v287, 0
      %v340 = vsel %vm320, %v288, 0
      %v343 = vsel %vm320, %v289, 0
      %v346 = vsel %vm320, %v290, 0
      %v349 = vsel %vm320, %v291, 0
      %v352 = vsel %vm320, %v292, 0
      %v355 = vsel %vm320, %v293, 0
      %v358 = vsel %vm320, %v294, 0
      %v361 = vsel %vm320, %v295, 0
      %v364 = vsel %vm320, %v296, 0
      %v367 = vsel %vm320, %v297, 0
      %v370 = vsel %vm320, %v298, 0
      %v373 = vsel %vm320, %v299, 0
      %v376 = vsel %vm320, %v300, 0
      %v379 = vsel %vm320, %v301, 0
      %v382 = vsel %vm320, %v302, 0
      %v385 = vsel %vm320, %v303, 0
      %v388 = vsel %vm320, %v304, 0
      %v391 = vsel %vm320, %v305, 0
      %v394 = vsel %vm320, %v306, 0
      %v397 = vsel %vm320, %v307, 0
      %v400 = vsel %vm320, %v308, 0
      %v403 = vsel %vm320, %v309, 0
      %v406 = vsel %vm320, %v310, 0
      %v409 = vsel %vm320, %v311, 0
      %v412 = vsel %vm320, %v312, 0
      %v415 = vsel %vm320, %v313, 0
      %417 = vmatpush.msra.mxu0 0.0
      %418 = vmatpush.msra.mxu0 0.0
      %419 = vmatpush.msra.mxu0 0.0
      %420 = vmatpush.msra.mxu0 0.0
      %421 = vmatpush.msra.mxu0 0.0
      %422 = vmatpush.msra.mxu0 0.0
      %423 = vmatpush.msra.mxu0 0.0
      %424 = vmatpush.msra.mxu0 0.0
      %425 = vmatpush.msra.mxu0 0.0
      %426 = vmatpush.msra.mxu0 0.0
      %427 = vmatpush.msra.mxu0 0.0
      %428 = vmatpush.msra.mxu0 0.0
      %429 = vmatpush.msra.mxu0 0.0
      %430 = vmatpush.msra.mxu0 0.0
      %431 = vmatpush.msra.mxu0 %v315
      %432 = vmatpush.msra.mxu0 %v314
      %433 = vmatmul.f32.gmra.mxu0 %v322
      %v434 = vpop.f32.mrf.mxu0
      %v435 = vadd.f32 %v318, %v434
      %436 = vmatmul.f32.gmra.mxu0 %v325
      %v437 = vpop.f32.mrf.mxu0
      %v438 = vadd.f32 %v318, %v437
      %439 = vmatmul.f32.gmra.mxu0 %v328
      %v440 = vpop.f32.mrf.mxu0
      %v441 = vadd.f32 %v318, %v440
      %442 = vmatmul.f32.gmra.mxu0 %v331
      %v443 = vpop.f32.mrf.mxu0
      %v444 = vadd.f32 %v318, %v443
      %445 = vmatmul.f32.gmra.mxu0 %v334
      %v446 = vpop.f32.mrf.mxu0
      %v447 = vadd.f32 %v318, %v446
      %448 = vmatmul.f32.gmra.mxu0 %v337
      %v449 = vpop.f32.mrf.mxu0
      %v450 = vadd.f32 %v318, %v449
      %451 = vmatmul.f32.gmra.mxu0 %v340
      %v452 = vpop.f32.mrf.mxu0
      %v453 = vadd.f32 %v318, %v452
      %454 = vmatmul.f32.gmra.mxu0 %v343
      %v455 = vpop.f32.mrf.mxu0
      %v456 = vadd.f32 %v318, %v455
      %457 = vmatmul.f32.gmra.mxu0 %v346
      %v458 = vpop.f32.mrf.mxu0
      %v459 = vadd.f32 %v318, %v458
      %460 = vmatmul.f32.gmra.mxu0 %v349
      %v461 = vpop.f32.mrf.mxu0
      %v462 = vadd.f32 %v318, %v461
      %463 = vmatmul.f32.gmra.mxu0 %v352
      %v464 = vpop.f32.mrf.mxu0
      %v465 = vadd.f32 %v318, %v464
      %466 = vmatmul.f32.gmra.mxu0 %v355
      %v467 = vpop.f32.mrf.mxu0
      %v468 = vadd.f32 %v318, %v467
      %469 = vmatmul.f32.gmra.mxu0 %v358
      %v470 = vpop.f32.mrf.mxu0
      %v471 = vadd.f32 %v318, %v470
      %472 = vmatmul.f32.gmra.mxu0 %v361
      %v473 = vpop.f32.mrf.mxu0
      %v474 = vadd.f32 %v318, %v473
      %475 = vmatmul.f32.gmra.mxu0 %v364
      %v476 = vpop.f32.mrf.mxu0
      %v477 = vadd.f32 %v318, %v476
      %478 = vmatmul.f32.gmra.mxu0 %v367
      %v479 = vpop.f32.mrf.mxu0
      %v480 = vadd.f32 %v318, %v479
      %481 = vmatmul.f32.gmra.mxu0 %v370
      %v482 = vpop.f32.mrf.mxu0
      %v483 = vadd.f32 %v318, %v482
      %484 = vmatmul.f32.gmra.mxu0 %v373
      %v485 = vpop.f32.mrf.mxu0
      %v486 = vadd.f32 %v318, %v485
      %487 = vmatmul.f32.gmra.mxu0 %v376
      %v488 = vpop.f32.mrf.mxu0
      %v489 = vadd.f32 %v318, %v488
      %490 = vmatmul.f32.gmra.mxu0 %v379
      %v491 = vpop.f32.mrf.mxu0
      %v492 = vadd.f32 %v318, %v491
      %493 = vmatmul.f32.gmra.mxu0 %v382
      %v494 = vpop.f32.mrf.mxu0
      %v495 = vadd.f32 %v318, %v494
      %496 = vmatmul.f32.gmra.mxu0 %v385
      %v497 = vpop.f32.mrf.mxu0
      %v498 = vadd.f32 %v318, %v497
      %499 = vmatmul.f32.gmra.mxu0 %v388
      %v500 = vpop.f32.mrf.mxu0
      %v501 = vadd.f32 %v318, %v500
      %502 = vmatmul.f32.gmra.mxu0 %v391
      %v503 = vpop.f32.mrf.mxu0
      %v504 = vadd.f32 %v318, %v503
      %505 = vmatmul.f32.gmra.mxu0 %v394
      %v506 = vpop.f32.mrf.mxu0
      %v507 = vadd.f32 %v318, %v506
      %508 = vmatmul.f32.gmra.mxu0 %v397
      %v509 = vpop.f32.mrf.mxu0
      %v510 = vadd.f32 %v318, %v509
      %511 = vmatmul.f32.gmra.mxu0 %v400
      %v512 = vpop.f32.mrf.mxu0
      %v513 = vadd.f32 %v318, %v512
      %514 = vmatmul.f32.gmra.mxu0 %v403
      %v515 = vpop.f32.mrf.mxu0
      %v516 = vadd.f32 %v318, %v515
      %517 = vmatmul.f32.gmra.mxu0 %v406
      %v518 = vpop.f32.mrf.mxu0
      %v519 = vadd.f32 %v318, %v518
      %520 = vmatmul.f32.gmra.mxu0 %v409
      %v521 = vpop.f32.mrf.mxu0
      %v522 = vadd.f32 %v318, %v521
      %523 = vmatmul.f32.gmra.mxu0 %v412
      %v524 = vpop.f32.mrf.mxu0
      %v525 = vadd.f32 %v318, %v524
      %526 = vmatmul.f32.gmra.mxu0 %v415
      %v527 = vpop.f32.mrf.mxu0
      %v528 = vadd.f32 %v318, %v527
      %529 = vdwg.mxu0
      %v530 = vmul.f32 %v435, 0.01
      %v531 = vmul.f32 %v438, 0.01
      %v532 = vmul.f32 %v441, 0.01
      %v533 = vmul.f32 %v444, 0.01
      %v534 = vmul.f32 %v447, 0.01
      %v535 = vmul.f32 %v450, 0.01
      %v536 = vmul.f32 %v453, 0.01
      %v537 = vmul.f32 %v456, 0.01
      %v538 = vmul.f32 %v459, 0.01
      %v539 = vmul.f32 %v462, 0.01
      %v540 = vmul.f32 %v465, 0.01
      %v541 = vmul.f32 %v468, 0.01
      %v542 = vmul.f32 %v471, 0.01
      %v543 = vmul.f32 %v474, 0.01
      %v544 = vmul.f32 %v477, 0.01
      %v545 = vmul.f32 %v480, 0.01
      %v546 = vmul.f32 %v483, 0.01
      %v547 = vmul.f32 %v486, 0.01
      %v548 = vmul.f32 %v489, 0.01
      %v549 = vmul.f32 %v492, 0.01
      %v550 = vmul.f32 %v495, 0.01
      %v551 = vmul.f32 %v498, 0.01
      %v552 = vmul.f32 %v501, 0.01
      %v553 = vmul.f32 %v504, 0.01
      %v554 = vmul.f32 %v507, 0.01
      %v555 = vmul.f32 %v510, 0.01
      %v556 = vmul.f32 %v513, 0.01
      %v557 = vmul.f32 %v516, 0.01
      %v558 = vmul.f32 %v519, 0.01
      %v559 = vmul.f32 %v522, 0.01
      %v560 = vmul.f32 %v525, 0.01
      %v561 = vmul.f32 %v528, 0.01
      %v562 = vmax.f32 %v435, %v530
      %v563 = vmax.f32 %v438, %v531
      %v564 = vmax.f32 %v441, %v532
      %v565 = vmax.f32 %v444, %v533
      %v566 = vmax.f32 %v447, %v534
      %v567 = vmax.f32 %v450, %v535
      %v568 = vmax.f32 %v453, %v536
      %v569 = vmax.f32 %v456, %v537
      %v570 = vmax.f32 %v459, %v538
      %v571 = vmax.f32 %v462, %v539
      %v572 = vmax.f32 %v465, %v540
      %v573 = vmax.f32 %v468, %v541
      %v574 = vmax.f32 %v471, %v542
      %v575 = vmax.f32 %v474, %v543
      %v576 = vmax.f32 %v477, %v544
      %v577 = vmax.f32 %v480, %v545
      %v578 = vmax.f32 %v483, %v546
      %v579 = vmax.f32 %v486, %v547
      %v580 = vmax.f32 %v489, %v548
      %v581 = vmax.f32 %v492, %v549
      %v582 = vmax.f32 %v495, %v550
      %v583 = vmax.f32 %v498, %v551
      %v584 = vmax.f32 %v501, %v552
      %v585 = vmax.f32 %v504, %v553
      %v586 = vmax.f32 %v507, %v554
      %v587 = vmax.f32 %v510, %v555
      %v588 = vmax.f32 %v513, %v556
      %v589 = vmax.f32 %v516, %v557
      %v590 = vmax.f32 %v519, %v558
      %v591 = vmax.f32 %v522, %v559
      %v592 = vmax.f32 %v525, %v560
      %v593 = vmax.f32 %v528, %v561
      %v594 = vld [vmem:[%s3] sm:$0xff]
      %v595 = vld [vmem:[%s3 + $0x8] sm:$0xff]
      %v596 = vld [vmem:[%s3 + $0x10] sm:$0xff]
      %v597 = vld [vmem:[%s3 + $0x18] sm:$0xff]
      %v598 = vld [vmem:[%s3 + $0x20] sm:$0xff]
      %v599 = vld [vmem:[%s3 + $0x28] sm:$0xff]
      %v600 = vld [vmem:[%s3 + $0x30] sm:$0xff]
      %v601 = vld [vmem:[%s3 + $0x38] sm:$0xff]
      %v602 = vld [vmem:[%s4] sm:$0x1]
      %v604 = vperm.slane %v602, 0
      %vm606 = vcmask 523264
      %v608 = vsel %vm606, %v562, 0
      %v611 = vsel %vm606, %v563, 0
      %v614 = vsel %vm606, %v564, 0
      %v617 = vsel %vm606, %v565, 0
      %v620 = vsel %vm606, %v566, 0
      %v623 = vsel %vm606, %v567, 0
      %v626 = vsel %vm606, %v568, 0
      %v629 = vsel %vm606, %v569, 0
      %v632 = vsel %vm606, %v570, 0
      %v635 = vsel %vm606, %v571, 0
      %v638 = vsel %vm606, %v572, 0
      %v641 = vsel %vm606, %v573, 0
      %v644 = vsel %vm606, %v574, 0
      %v647 = vsel %vm606, %v575, 0
      %v650 = vsel %vm606, %v576, 0
      %v653 = vsel %vm606, %v577, 0
      %v656 = vsel %vm606, %v578, 0
      %v659 = vsel %vm606, %v579, 0
      %v662 = vsel %vm606, %v580, 0
      %v665 = vsel %vm606, %v581, 0
      %v668 = vsel %vm606, %v582, 0
      %v671 = vsel %vm606, %v583, 0
      %v674 = vsel %vm606, %v584, 0
      %v677 = vsel %vm606, %v585, 0
      %v680 = vsel %vm606, %v586, 0
      %v683 = vsel %vm606, %v587, 0
      %v686 = vsel %vm606, %v588, 0
      %v689 = vsel %vm606, %v589, 0
      %v692 = vsel %vm606, %v590, 0
      %v695 = vsel %vm606, %v591, 0
      %v698 = vsel %vm606, %v592, 0
      %v701 = vsel %vm606, %v593, 0
      %703 = vmatpush.msra.mxu0 0.0
      %704 = vmatpush.msra.mxu0 0.0
      %705 = vmatpush.msra.mxu0 0.0
      %706 = vmatpush.msra.mxu0 0.0
      %707 = vmatpush.msra.mxu0 0.0
      %708 = vmatpush.msra.mxu0 0.0
      %709 = vmatpush.msra.mxu0 0.0
      %710 = vmatpush.msra.mxu0 0.0
      %711 = vmatpush.msra.mxu0 %v601
      %712 = vmatpush.msra.mxu0 %v600
      %713 = vmatpush.msra.mxu0 %v599
      %714 = vmatpush.msra.mxu0 %v598
      %715 = vmatpush.msra.mxu0 %v597
      %716 = vmatpush.msra.mxu0 %v596
      %717 = vmatpush.msra.mxu0 %v595
      %718 = vmatpush.msra.mxu0 %v594
      %719 = vmatmul.f32.gmra.mxu0 %v608
      %v720 = vpop.f32.mrf.mxu0
      %v721 = vadd.f32 %v604, %v720
      %722 = vmatmul.f32.gmra.mxu0 %v611
      %v723 = vpop.f32.mrf.mxu0
      %v724 = vadd.f32 %v604, %v723
      %725 = vmatmul.f32.gmra.mxu0 %v614
      %v726 = vpop.f32.mrf.mxu0
      %v727 = vadd.f32 %v604, %v726
      %728 = vmatmul.f32.gmra.mxu0 %v617
      %v729 = vpop.f32.mrf.mxu0
      %v730 = vadd.f32 %v604, %v729
      %731 = vmatmul.f32.gmra.mxu0 %v620
      %v732 = vpop.f32.mrf.mxu0
      %v733 = vadd.f32 %v604, %v732
      %734 = vmatmul.f32.gmra.mxu0 %v623
      %v735 = vpop.f32.mrf.mxu0
      %v736 = vadd.f32 %v604, %v735
      %737 = vmatmul.f32.gmra.mxu0 %v626
      %v738 = vpop.f32.mrf.mxu0
      %v739 = vadd.f32 %v604, %v738
      %740 = vmatmul.f32.gmra.mxu0 %v629
      %v741 = vpop.f32.mrf.mxu0
      %v742 = vadd.f32 %v604, %v741
      %743 = vmatmul.f32.gmra.mxu0 %v632
      %v744 = vpop.f32.mrf.mxu0
      %v745 = vadd.f32 %v604, %v744
      %746 = vmatmul.f32.gmra.mxu0 %v635
      %v747 = vpop.f32.mrf.mxu0
      %v748 = vadd.f32 %v604, %v747
      %749 = vmatmul.f32.gmra.mxu0 %v638
      %v750 = vpop.f32.mrf.mxu0
      %v751 = vadd.f32 %v604, %v750
      %752 = vmatmul.f32.gmra.mxu0 %v641
      %v753 = vpop.f32.mrf.mxu0
      %v754 = vadd.f32 %v604, %v753
      %755 = vmatmul.f32.gmra.mxu0 %v644
      %v756 = vpop.f32.mrf.mxu0
      %v757 = vadd.f32 %v604, %v756
      %758 = vmatmul.f32.gmra.mxu0 %v647
      %v759 = vpop.f32.mrf.mxu0
      %v760 = vadd.f32 %v604, %v759
      %761 = vmatmul.f32.gmra.mxu0 %v650
      %v762 = vpop.f32.mrf.mxu0
      %v763 = vadd.f32 %v604, %v762
      %764 = vmatmul.f32.gmra.mxu0 %v653
      %v765 = vpop.f32.mrf.mxu0
      %v766 = vadd.f32 %v604, %v765
      %767 = vmatmul.f32.gmra.mxu0 %v656
      %v768 = vpop.f32.mrf.mxu0
      %v769 = vadd.f32 %v604, %v768
      %770 = vmatmul.f32.gmra.mxu0 %v659
      %v771 = vpop.f32.mrf.mxu0
      %v772 = vadd.f32 %v604, %v771
      %773 = vmatmul.f32.gmra.mxu0 %v662
      %v774 = vpop.f32.mrf.mxu0
      %v775 = vadd.f32 %v604, %v774
      %776 = vmatmul.f32.gmra.mxu0 %v665
      %v777 = vpop.f32.mrf.mxu0
      %v778 = vadd.f32 %v604, %v777
      %779 = vmatmul.f32.gmra.mxu0 %v668
      %v780 = vpop.f32.mrf.mxu0
      %v781 = vadd.f32 %v604, %v780
      %782 = vmatmul.f32.gmra.mxu0 %v671
      %v783 = vpop.f32.mrf.mxu0
      %v784 = vadd.f32 %v604, %v783
      %785 = vmatmul.f32.gmra.mxu0 %v674
      %v786 = vpop.f32.mrf.mxu0
      %v787 = vadd.f32 %v604, %v786
      %788 = vmatmul.f32.gmra.mxu0 %v677
      %v789 = vpop.f32.mrf.mxu0
      %v790 = vadd.f32 %v604, %v789
      %791 = vmatmul.f32.gmra.mxu0 %v680
      %v792 = vpop.f32.mrf.mxu0
      %v793 = vadd.f32 %v604, %v792
      %794 = vmatmul.f32.gmra.mxu0 %v683
      %v795 = vpop.f32.mrf.mxu0
      %v796 = vadd.f32 %v604, %v795
      %797 = vmatmul.f32.gmra.mxu0 %v686
      %v798 = vpop.f32.mrf.mxu0
      %v799 = vadd.f32 %v604, %v798
      %800 = vmatmul.f32.gmra.mxu0 %v689
      %v801 = vpop.f32.mrf.mxu0
      %v802 = vadd.f32 %v604, %v801
      %803 = vmatmul.f32.gmra.mxu0 %v692
      %v804 = vpop.f32.mrf.mxu0
      %v805 = vadd.f32 %v604, %v804
      %806 = vmatmul.f32.gmra.mxu0 %v695
      %v807 = vpop.f32.mrf.mxu0
      %v808 = vadd.f32 %v604, %v807
      %809 = vmatmul.f32.gmra.mxu0 %v698
      %v810 = vpop.f32.mrf.mxu0
      %v811 = vadd.f32 %v604, %v810
      %812 = vmatmul.f32.gmra.mxu0 %v701
      %v813 = vpop.f32.mrf.mxu0
      %v814 = vadd.f32 %v604, %v813
      %815 = vdwg.mxu0
      %v816 = vmul.f32 %v721, 0.01
      %v817 = vmul.f32 %v724, 0.01
      %v818 = vmul.f32 %v727, 0.01
      %v819 = vmul.f32 %v730, 0.01
      %v820 = vmul.f32 %v733, 0.01
      %v821 = vmul.f32 %v736, 0.01
      %v822 = vmul.f32 %v739, 0.01
      %v823 = vmul.f32 %v742, 0.01
      %v824 = vmul.f32 %v745, 0.01
      %v825 = vmul.f32 %v748, 0.01
      %v826 = vmul.f32 %v751, 0.01
      %v827 = vmul.f32 %v754, 0.01
      %v828 = vmul.f32 %v757, 0.01
      %v829 = vmul.f32 %v760, 0.01
      %v830 = vmul.f32 %v763, 0.01
      %v831 = vmul.f32 %v766, 0.01
      %v832 = vmul.f32 %v769, 0.01
      %v833 = vmul.f32 %v772, 0.01
      %v834 = vmul.f32 %v775, 0.01
      %v835 = vmul.f32 %v778, 0.01
      %v836 = vmul.f32 %v781, 0.01
      %v837 = vmul.f32 %v784, 0.01
      %v838 = vmul.f32 %v787, 0.01
      %v839 = vmul.f32 %v790, 0.01
      %v840 = vmul.f32 %v793, 0.01
      %v841 = vmul.f32 %v796, 0.01
      %v842 = vmul.f32 %v799, 0.01
      %v843 = vmul.f32 %v802, 0.01
      %v844 = vmul.f32 %v805, 0.01
      %v845 = vmul.f32 %v808, 0.01
      %v846 = vmul.f32 %v811, 0.01
      %v847 = vmul.f32 %v814, 0.01
      %v848 = vmax.f32 %v721, %v816
      %v849 = vmax.f32 %v724, %v817
      %v850 = vmax.f32 %v727, %v818
      %v851 = vmax.f32 %v730, %v819
      %v852 = vmax.f32 %v733, %v820
      %v853 = vmax.f32 %v736, %v821
      %v854 = vmax.f32 %v739, %v822
      %v855 = vmax.f32 %v742, %v823
      %v856 = vmax.f32 %v745, %v824
      %v857 = vmax.f32 %v748, %v825
      %v858 = vmax.f32 %v751, %v826
      %v859 = vmax.f32 %v754, %v827
      %v860 = vmax.f32 %v757, %v828
      %v861 = vmax.f32 %v760, %v829
      %v862 = vmax.f32 %v763, %v830
      %v863 = vmax.f32 %v766, %v831
      %v864 = vmax.f32 %v769, %v832
      %v865 = vmax.f32 %v772, %v833
      %v866 = vmax.f32 %v775, %v834
      %v867 = vmax.f32 %v778, %v835
      %v868 = vmax.f32 %v781, %v836
      %v869 = vmax.f32 %v784, %v837
      %v870 = vmax.f32 %v787, %v838
      %v871 = vmax.f32 %v790, %v839
      %v872 = vmax.f32 %v793, %v840
      %v873 = vmax.f32 %v796, %v841
      %v874 = vmax.f32 %v799, %v842
      %v875 = vmax.f32 %v802, %v843
      %v876 = vmax.f32 %v805, %v844
      %v877 = vmax.f32 %v808, %v845
      %v878 = vmax.f32 %v811, %v846
      %v879 = vmax.f32 %v814, %v847
      %v880 = vld [vmem:[%s5] sm:$0xff]
      %v881 = vld [vmem:[%s5 + $0x8] sm:$0xff]
      %v882 = vld [vmem:[%s5 + $0x10] sm:$0xff]
      %v883 = vld [vmem:[%s5 + $0x18] sm:$0xff]
      %v884 = vld [vmem:[%s5 + $0x20] sm:$0xff]
      %v885 = vld [vmem:[%s5 + $0x28] sm:$0xff]
      %v886 = vld [vmem:[%s5 + $0x30] sm:$0xff]
      %v887 = vld [vmem:[%s5 + $0x38] sm:$0xff]
      %v888 = vld [vmem:[%s6] sm:$0x1]
      %v890 = vperm.slane %v888, 0
      %v893 = vsel %vm606, %v848, 0
      %v896 = vsel %vm606, %v849, 0
      %v899 = vsel %vm606, %v850, 0
      %v902 = vsel %vm606, %v851, 0
      %v905 = vsel %vm606, %v852, 0
      %v908 = vsel %vm606, %v853, 0
      %v911 = vsel %vm606, %v854, 0
      %v914 = vsel %vm606, %v855, 0
      %v917 = vsel %vm606, %v856, 0
      %v920 = vsel %vm606, %v857, 0
      %v923 = vsel %vm606, %v858, 0
      %v926 = vsel %vm606, %v859, 0
      %v929 = vsel %vm606, %v860, 0
      %v932 = vsel %vm606, %v861, 0
      %v935 = vsel %vm606, %v862, 0
      %v938 = vsel %vm606, %v863, 0
      %v941 = vsel %vm606, %v864, 0
      %v944 = vsel %vm606, %v865, 0
      %v947 = vsel %vm606, %v866, 0
      %v950 = vsel %vm606, %v867, 0
      %v953 = vsel %vm606, %v868, 0
      %v956 = vsel %vm606, %v869, 0
      %v959 = vsel %vm606, %v870, 0
      %v962 = vsel %vm606, %v871, 0
      %v965 = vsel %vm606, %v872, 0
      %v968 = vsel %vm606, %v873, 0
      %v971 = vsel %vm606, %v874, 0
      %v974 = vsel %vm606, %v875, 0
      %v977 = vsel %vm606, %v876, 0
      %v980 = vsel %vm606, %v877, 0
      %v983 = vsel %vm606, %v878, 0
      %v986 = vsel %vm606, %v879, 0
      %988 = vmatpush.msra.mxu0 0.0
      %989 = vmatpush.msra.mxu0 0.0
      %990 = vmatpush.msra.mxu0 0.0
      %991 = vmatpush.msra.mxu0 0.0
      %992 = vmatpush.msra.mxu0 0.0
      %993 = vmatpush.msra.mxu0 0.0
      %994 = vmatpush.msra.mxu0 0.0
      %995 = vmatpush.msra.mxu0 0.0
      %996 = vmatpush.msra.mxu0 %v887
      %997 = vmatpush.msra.mxu0 %v886
      %998 = vmatpush.msra.mxu0 %v885
      %999 = vmatpush.msra.mxu0 %v884
      %1000 = vmatpush.msra.mxu0 %v883
      %1001 = vmatpush.msra.mxu0 %v882
      %1002 = vmatpush.msra.mxu0 %v881
      %1003 = vmatpush.msra.mxu0 %v880
      %1004 = vmatmul.f32.gmra.mxu0 %v893
      %v1005 = vpop.f32.mrf.mxu0
      %v1006 = vadd.f32 %v890, %v1005
      %1007 = vmatmul.f32.gmra.mxu0 %v896
      %v1008 = vpop.f32.mrf.mxu0
      %v1009 = vadd.f32 %v890, %v1008
      %1010 = vmatmul.f32.gmra.mxu0 %v899
      %v1011 = vpop.f32.mrf.mxu0
      %v1012 = vadd.f32 %v890, %v1011
      %1013 = vmatmul.f32.gmra.mxu0 %v902
      %v1014 = vpop.f32.mrf.mxu0
      %v1015 = vadd.f32 %v890, %v1014
      %1016 = vmatmul.f32.gmra.mxu0 %v905
      %v1017 = vpop.f32.mrf.mxu0
      %v1018 = vadd.f32 %v890, %v1017
      %1019 = vmatmul.f32.gmra.mxu0 %v908
      %v1020 = vpop.f32.mrf.mxu0
      %v1021 = vadd.f32 %v890, %v1020
      %1022 = vmatmul.f32.gmra.mxu0 %v911
      %v1023 = vpop.f32.mrf.mxu0
      %v1024 = vadd.f32 %v890, %v1023
      %1025 = vmatmul.f32.gmra.mxu0 %v914
      %v1026 = vpop.f32.mrf.mxu0
      %v1027 = vadd.f32 %v890, %v1026
      %1028 = vmatmul.f32.gmra.mxu0 %v917
      %v1029 = vpop.f32.mrf.mxu0
      %v1030 = vadd.f32 %v890, %v1029
      %1031 = vmatmul.f32.gmra.mxu0 %v920
      %v1032 = vpop.f32.mrf.mxu0
      %v1033 = vadd.f32 %v890, %v1032
      %1034 = vmatmul.f32.gmra.mxu0 %v923
      %v1035 = vpop.f32.mrf.mxu0
      %v1036 = vadd.f32 %v890, %v1035
      %1037 = vmatmul.f32.gmra.mxu0 %v926
      %v1038 = vpop.f32.mrf.mxu0
      %v1039 = vadd.f32 %v890, %v1038
      %1040 = vmatmul.f32.gmra.mxu0 %v929
      %v1041 = vpop.f32.mrf.mxu0
      %v1042 = vadd.f32 %v890, %v1041
      %1043 = vmatmul.f32.gmra.mxu0 %v932
      %v1044 = vpop.f32.mrf.mxu0
      %v1045 = vadd.f32 %v890, %v1044
      %1046 = vmatmul.f32.gmra.mxu0 %v935
      %v1047 = vpop.f32.mrf.mxu0
      %v1048 = vadd.f32 %v890, %v1047
      %1049 = vmatmul.f32.gmra.mxu0 %v938
      %v1050 = vpop.f32.mrf.mxu0
      %v1051 = vadd.f32 %v890, %v1050
      %1052 = vmatmul.f32.gmra.mxu0 %v941
      %v1053 = vpop.f32.mrf.mxu0
      %v1054 = vadd.f32 %v890, %v1053
      %1055 = vmatmul.f32.gmra.mxu0 %v944
      %v1056 = vpop.f32.mrf.mxu0
      %v1057 = vadd.f32 %v890, %v1056
      %1058 = vmatmul.f32.gmra.mxu0 %v947
      %v1059 = vpop.f32.mrf.mxu0
      %v1060 = vadd.f32 %v890, %v1059
      %1061 = vmatmul.f32.gmra.mxu0 %v950
      %v1062 = vpop.f32.mrf.mxu0
      %v1063 = vadd.f32 %v890, %v1062
      %1064 = vmatmul.f32.gmra.mxu0 %v953
      %v1065 = vpop.f32.mrf.mxu0
      %v1066 = vadd.f32 %v890, %v1065
      %1067 = vmatmul.f32.gmra.mxu0 %v956
      %v1068 = vpop.f32.mrf.mxu0
      %v1069 = vadd.f32 %v890, %v1068
      %1070 = vmatmul.f32.gmra.mxu0 %v959
      %v1071 = vpop.f32.mrf.mxu0
      %v1072 = vadd.f32 %v890, %v1071
      %1073 = vmatmul.f32.gmra.mxu0 %v962
      %v1074 = vpop.f32.mrf.mxu0
      %v1075 = vadd.f32 %v890, %v1074
      %1076 = vmatmul.f32.gmra.mxu0 %v965
      %v1077 = vpop.f32.mrf.mxu0
      %v1078 = vadd.f32 %v890, %v1077
      %1079 = vmatmul.f32.gmra.mxu0 %v968
      %v1080 = vpop.f32.mrf.mxu0
      %v1081 = vadd.f32 %v890, %v1080
      %1082 = vmatmul.f32.gmra.mxu0 %v971
      %v1083 = vpop.f32.mrf.mxu0
      %v1084 = vadd.f32 %v890, %v1083
      %1085 = vmatmul.f32.gmra.mxu0 %v974
      %v1086 = vpop.f32.mrf.mxu0
      %v1087 = vadd.f32 %v890, %v1086
      %1088 = vmatmul.f32.gmra.mxu0 %v977
      %v1089 = vpop.f32.mrf.mxu0
      %v1090 = vadd.f32 %v890, %v1089
      %1091 = vmatmul.f32.gmra.mxu0 %v980
      %v1092 = vpop.f32.mrf.mxu0
      %v1093 = vadd.f32 %v890, %v1092
      %1094 = vmatmul.f32.gmra.mxu0 %v983
      %v1095 = vpop.f32.mrf.mxu0
      %v1096 = vadd.f32 %v890, %v1095
      %1097 = vmatmul.f32.gmra.mxu0 %v986
      %v1098 = vpop.f32.mrf.mxu0
      %v1099 = vadd.f32 %v890, %v1098
      %1100 = vdwg.mxu0
      %vm1101 = vcmask 64512
      %1102 = vst.msk [vmem:[%s280] sm:$0xff] %vm1101, %v1006
      %1103 = vst.msk [vmem:[%s280 + $0x8] sm:$0xff] %vm1101, %v1009
      %1104 = vst.msk [vmem:[%s280 + $0x10] sm:$0xff] %vm1101, %v1012
      %1105 = vst.msk [vmem:[%s280 + $0x18] sm:$0xff] %vm1101, %v1015
      %1106 = vst.msk [vmem:[%s280 + $0x20] sm:$0xff] %vm1101, %v1018
      %1107 = vst.msk [vmem:[%s280 + $0x28] sm:$0xff] %vm1101, %v1021
      %1108 = vst.msk [vmem:[%s280 + $0x30] sm:$0xff] %vm1101, %v1024
      %1109 = vst.msk [vmem:[%s280 + $0x38] sm:$0xff] %vm1101, %v1027
      %1110 = vst.msk [vmem:[%s280 + $0x40] sm:$0xff] %vm1101, %v1030
      %1111 = vst.msk [vmem:[%s280 + $0x48] sm:$0xff] %vm1101, %v1033
      %1112 = vst.msk [vmem:[%s280 + $0x50] sm:$0xff] %vm1101, %v1036
      %1113 = vst.msk [vmem:[%s280 + $0x58] sm:$0xff] %vm1101, %v1039
      %1114 = vst.msk [vmem:[%s280 + $0x60] sm:$0xff] %vm1101, %v1042
      %1115 = vst.msk [vmem:[%s280 + $0x68] sm:$0xff] %vm1101, %v1045
      %1116 = vst.msk [vmem:[%s280 + $0x70] sm:$0xff] %vm1101, %v1048
      %1117 = vst.msk [vmem:[%s280 + $0x78] sm:$0xff] %vm1101, %v1051
      %1118 = vst.msk [vmem:[%s280 + $0x80] sm:$0xff] %vm1101, %v1054
      %1119 = vst.msk [vmem:[%s280 + $0x88] sm:$0xff] %vm1101, %v1057
      %1120 = vst.msk [vmem:[%s280 + $0x90] sm:$0xff] %vm1101, %v1060
      %1121 = vst.msk [vmem:[%s280 + $0x98] sm:$0xff] %vm1101, %v1063
      %1122 = vst.msk [vmem:[%s280 + $0xa0] sm:$0xff] %vm1101, %v1066
      %1123 = vst.msk [vmem:[%s280 + $0xa8] sm:$0xff] %vm1101, %v1069
      %1124 = vst.msk [vmem:[%s280 + $0xb0] sm:$0xff] %vm1101, %v1072
      %1125 = vst.msk [vmem:[%s280 + $0xb8] sm:$0xff] %vm1101, %v1075
      %1126 = vst.msk [vmem:[%s280 + $0xc0] sm:$0xff] %vm1101, %v1078
      %1127 = vst.msk [vmem:[%s280 + $0xc8] sm:$0xff] %vm1101, %v1081
      %1128 = vst.msk [vmem:[%s280 + $0xd0] sm:$0xff] %vm1101, %v1084
      %1129 = vst.msk [vmem:[%s280 + $0xd8] sm:$0xff] %vm1101, %v1087
      %1130 = vst.msk [vmem:[%s280 + $0xe0] sm:$0xff] %vm1101, %v1090
      %1131 = vst.msk [vmem:[%s280 + $0xe8] sm:$0xff] %vm1101, %v1093
      %1132 = vst.msk [vmem:[%s280 + $0xf0] sm:$0xff] %vm1101, %v1096
      %1133 = vst.msk [vmem:[%s280 + $0xf8] sm:$0xff] %vm1101, %v1099
      %s1134 = smul.u32 32, %s18
      %p1135 = scmp.lt.s32.totalorder %s1134, 127
      %s1136 = scalar_select %p1135, %s1134, 127
      %s1137 = smul.addr %s1136, 8
      %s1138 = scalar_lea.vmem %s7, %s1137
      // Predicated region
      $region49: #{_dqn_pallas.1} parent=47 // pred_check
        %p1139 = pneg %p188
      $region50: #{_dqn_pallas.1} parent=47 // pred_check_branch
        %1141 = sbr.rel (%p1139) target = $region52
      $region51: #{_dqn_pallas.1} parent=47 // pred_region
        %s1142 = smul.u32 32, %s18
      $region52: #{_dqn_pallas.1} parent=47 // pred_fallthru
        _
    $region48: #{_dqn_pallas.1} parent=5 // pred_fallthru
      _
    %p1143 = scmp.le.s32.totalorder 2, %s13
    // Predicated region
    $region53: #{_dqn_pallas.1} parent=5 // pred_check
      %p1144 = pneg %p1143
    $region54: #{_dqn_pallas.1} parent=5 // pred_check_branch
      %1146 = sbr.rel (%p1144) target = $region56
    $region55: #{_dqn_pallas.1} parent=5 // pred_region
      %s1147 = ssub.s32 %s13, 2
      // Predicated region
      $region57: #{_dqn_pallas.1} parent=55 // pred_check
        %p1148 = pneg %p194
      $region58: #{_dqn_pallas.1} parent=55 // pred_check_branch
        %1150 = sbr.rel (%p1148) target = $region60
      $region59: #{_dqn_pallas.1} parent=55 // pred_region
        %s1151 = smul.u32 32, %s19
        %p1152 = scmp.lt.s32.totalorder %s1151, 127
        %s1153 = scalar_select %p1152, %s1151, 127
        %s1154 = smul.addr %s1153, 8
        %s1155 = scalar_lea.vmem %s7, %s1154
      $region60: #{_dqn_pallas.1} parent=55 // pred_fallthru
        _
    $region56: #{_dqn_pallas.1} parent=5 // pred_fallthru
      _
  $region6: #{_dqn_pallas.1} parent=0 // loop_footer
    %s17 = sadd.s32 1, %s13
  $region7: #{_dqn_pallas.1} parent=0 // loop_footer_branch
    %12 = sbr.rel target = $region3
  $region8: #{_dqn_pallas.1} parent=0 // loop_exit
    _

</llo_original>
